<compile_context>
chip_gen: v6e
topology: v6e:2x2x1
jax: 0.10.0
libtpu: 0.0.40
codegen_flags: <defaults>
</compile_context>

<pallas_src>
import jax
import jax.numpy as jnp
from jax.experimental import pallas as pl
from jax.experimental.pallas import tpu as pltpu

LANE = 128


def _round_up(a, b):
    return (a + b - 1) // b * b


# ---------------------------------------------------------------------------
# Kernel
# ---------------------------------------------------------------------------
def mlp_kernel(x_ref, w_ref, o_ref):
    # x_ref : (tile_m, P)  bf16, last column is the bias-activating "ones" lane
    # w_ref : (3, P, P)    bf16 packed [W | b-row | ones-diag] per layer
    # o_ref : (tile_m, P)  f32 lane-dense output (real outputs in cols [:out])
    x = x_ref[...]

    # linear1 + relu (bias folded into row P-1 of w_ref[0])
    h1 = jnp.dot(x, w_ref[0], preferred_element_type=jnp.float32)
    h1 = jnp.maximum(h1, 0.0)

    # linear2 + relu
    h2 = jnp.dot(h1.astype(jnp.bfloat16), w_ref[1],
                 preferred_element_type=jnp.float32)
    h2 = jnp.maximum(h2, 0.0)

    # linear3 + sigmoid (exp -> EUP, approx reciprocal -> EUP; no VALU divide)
    h3 = jnp.dot(h2.astype(jnp.bfloat16), w_ref[2],
                 preferred_element_type=jnp.float32)
    denom = 1.0 + jnp.exp(-h3)
    o_ref[...] = pl.reciprocal(denom, approx=True).astype(o_ref.dtype)


# ---------------------------------------------------------------------------
# Parameter setup (done once, outside the kernel)
# ---------------------------------------------------------------------------
def init_params(key, input_size, hidden_size, output_size):
    """nn.Linear-style init; weights stored [in, out] (transpose of PyTorch)."""
    keys = jax.random.split(key, 6)

    def linear(kw, kb, fan_in, fan_out):
        bound = 1.0 / jnp.sqrt(fan_in)
        w = jax.random.uniform(kw, (fan_in, fan_out), jnp.float32, -bound, bound)
        b = jax.random.uniform(kb, (fan_out,), jnp.float32, -bound, bound)
        return w, b

    w1, b1 = linear(keys[0], keys[1], input_size, hidden_size)
    w2, b2 = linear(keys[2], keys[3], hidden_size, hidden_size)
    w3, b3 = linear(keys[4], keys[5], hidden_size, output_size)
    return w1, b1, w2, b2, w3, b3


def pack_params(w1, b1, w2, b2, w3, b3, pad_dim):
    """Pack all weights+biases into one lane-padded (3, P, P) bf16 tensor.

    Each layer slab:  rows [:k, :n] = W,  row P-1 cols [:n] = b (activated by
    the ones column of the incoming activation), and [P-1, P-1] = 1 to
    propagate the ones column to the next layer (not needed for the last one).
    """
    P = pad_dim

    def pack_layer(w, b, propagate_ones):
        k, n = w.shape
        slab = jnp.zeros((P, P), jnp.float32)
        slab = slab.at[:k, :n].set(w)
        slab = slab.at[P - 1, :n].set(b)
        if propagate_ones:
            slab = slab.at[P - 1, P - 1].set(1.0)
        return slab

    packed = jnp.stack([
        pack_layer(w1, b1, True),
        pack_layer(w2, b2, True),
        pack_layer(w3, b3, False),
    ])
    return packed.astype(jnp.bfloat16)


# ---------------------------------------------------------------------------
# Wrapper
# ---------------------------------------------------------------------------
def mlp_forward(x, packed_w, out_size):
    batch, in_size = x.shape
    P = packed_w.shape[-1]

    # Batch tiling: 256-row tiles when the batch is large (feeds the 256-wide
    # MXU on v6e/v7x and shards across v7x cores); tiny batches run as one tile.
    tile_m = 256 if batch >= 256 else _round_up(batch, 8)
    batch_pad = _round_up(batch, tile_m)
    n_tiles = batch_pad // tile_m

    # Lane-dense input with bias-activating ones column: [x | 0 ... 0 | 1]
    x_pad = jnp.zeros((batch_pad, P), jnp.float32)
    x_pad = x_pad.at[:batch, :in_size].set(x)
    x_pad = x_pad.at[:, P - 1].set(1.0)
    x_pad = x_pad.astype(jnp.bfloat16)

    out_pad = pl.pallas_call(
        mlp_kernel,
        out_shape=jax.ShapeDtypeStruct((batch_pad, P), jnp.float32),
        grid=(n_tiles,),
        in_specs=[
            pl.BlockSpec((tile_m, P), lambda i: (i, 0)),
            pl.BlockSpec((3, P, P), lambda i: (0, 0, 0)),  # weights stay resident
        ],
        out_specs=pl.BlockSpec((tile_m, P), lambda i: (i, 0)),
        compiler_params=pltpu.CompilerParams(
            dimension_semantics=("parallel",)),
    )(x_pad, packed_w)

    return out_pad[:batch, :out_size]


# ---------------------------------------------------------------------------
# References
# ---------------------------------------------------------------------------
def reference_forward_f32(x, w1, b1, w2, b2, w3, b3):
    h1 = jnp.maximum(x @ w1 + b1, 0.0)
    h2 = jnp.maximum(h1 @ w2 + b2, 0.0)
    return jax.nn.sigmoid(h2 @ w3 + b3)


def reference_forward_bf16(x, w1, b1, w2, b2, w3, b3):
    bf, f32 = jnp.bfloat16, jnp.float32

    def layer(a, w, b):
        return (jnp.dot(a.astype(bf), w.astype(bf), preferred_element_type=f32)
                + b.astype(bf).astype(f32))

    h1 = jnp.maximum(layer(x, w1, b1), 0.0)
    h2 = jnp.maximum(layer(h1, w2, b2), 0.0)
    return jax.nn.sigmoid(layer(h2, w3, b3))


if __name__ == "__main__":
    key = jax.random.PRNGKey(0)
    k_x, k_p = jax.random.split(key)

    batch = 8
    input_size = 16
    hidden_size = 32
    output_size = 8

    x = jax.random.normal(k_x, (batch, input_size), jnp.float32)
    w1, b1, w2, b2, w3, b3 = init_params(k_p, input_size, hidden_size, output_size)

    # Pad to lane width, reserving the last lane for the bias/ones column.
    P = _round_up(max(input_size, hidden_size, output_size) + 1, LANE)
    packed_w = pack_params(w1, b1, w2, b2, w3, b3, P)

    out = mlp_forward(x, packed_w, output_size)
    out = jax.block_until_ready(out)

    ref_q = reference_forward_bf16(x, w1, b1, w2, b2, w3, b3)  # same quantization
    ref_f = reference_forward_f32(x, w1, b1, w2, b2, w3, b3)   # original semantics

    assert out.shape == (batch, output_size)
    assert jnp.allclose(out, ref_q, atol=2e-3), "mismatch vs bf16-matched reference"
    assert jnp.allclose(out, ref_f, atol=3e-2), "mismatch vs f32 reference"

    print("KERNEL_OK")
</pallas_src>

<mosaic_0001>
module attributes {stable_mosaic.version = 11 : i64} {
  func.func @mlp_kernel(%arg0: i32, %arg1: memref<8x128xbf16, #tpu.memory_space<vmem>>, %arg2: memref<3x128x128xbf16, #tpu.memory_space<vmem>>, %arg3: memref<8x128xf32, #tpu.memory_space<vmem>>) attributes {dimension_semantics = [#tpu.dimension_semantics<parallel>], iteration_bounds = array<i64: 1>, scalar_prefetch = 0 : i64, scratch_operands = 0 : i64, tpu.core_type = #tpu.core_type<tc>, window_params = [{transform_indices = @transform_0, window_bounds = array<i64: 8, 128>}, {pipeline_mode = #tpu.pipeline_mode<synchronous>, transform_indices = @transform_1, window_bounds = array<i64: 3, 128, 128>}, {transform_indices = @transform_2, window_bounds = array<i64: 8, 128>}]} {
    %c0 = arith.constant 0 : index
    %c0_0 = arith.constant 0 : index
    %0 = vector.load %arg1[%c0, %c0_0] : memref<8x128xbf16, #tpu.memory_space<vmem>>, vector<8x128xbf16>
    %c0_1 = arith.constant 0 : index
    %c0_2 = arith.constant 0 : index
    %c0_3 = arith.constant 0 : index
    %1 = vector.load %arg2[%c0_1, %c0_2, %c0_3] : memref<3x128x128xbf16, #tpu.memory_space<vmem>>, vector<1x128x128xbf16>
    %2 = vector.shape_cast %1 : vector<1x128x128xbf16> to vector<128x128xbf16>
    %cst = arith.constant dense<0.000000e+00> : vector<8x128xf32>
    %3 = tpu.matmul %0, %2, %cst {dimension_numbers = #tpu.dot_dimension_numbers<[1], [0], [0], [1], [0, 0, 1, 1], [], []>} : vector<8x128xbf16>, vector<128x128xbf16>, vector<8x128xf32> -> vector<8x128xf32>
    %cst_4 = arith.constant 0.000000e+00 : f32
    %4 = vector.broadcast %cst_4 : f32 to vector<8x128xf32>
    %5 = arith.maximumf %3, %4 : vector<8x128xf32>
    %6 = arith.truncf %5 : vector<8x128xf32> to vector<8x128xbf16>
    %c1 = arith.constant 1 : index
    %c0_5 = arith.constant 0 : index
    %c0_6 = arith.constant 0 : index
    %7 = vector.load %arg2[%c1, %c0_5, %c0_6] : memref<3x128x128xbf16, #tpu.memory_space<vmem>>, vector<1x128x128xbf16>
    %8 = vector.shape_cast %7 : vector<1x128x128xbf16> to vector<128x128xbf16>
    %cst_7 = arith.constant dense<0.000000e+00> : vector<8x128xf32>
    %9 = tpu.matmul %6, %8, %cst_7 {dimension_numbers = #tpu.dot_dimension_numbers<[1], [0], [0], [1], [0, 0, 1, 1], [], []>} : vector<8x128xbf16>, vector<128x128xbf16>, vector<8x128xf32> -> vector<8x128xf32>
    %cst_8 = arith.constant 0.000000e+00 : f32
    %10 = vector.broadcast %cst_8 : f32 to vector<8x128xf32>
    %11 = arith.maximumf %9, %10 : vector<8x128xf32>
    %12 = arith.truncf %11 : vector<8x128xf32> to vector<8x128xbf16>
    %c2 = arith.constant 2 : index
    %c0_9 = arith.constant 0 : index
    %c0_10 = arith.constant 0 : index
    %13 = vector.load %arg2[%c2, %c0_9, %c0_10] : memref<3x128x128xbf16, #tpu.memory_space<vmem>>, vector<1x128x128xbf16>
    %14 = vector.shape_cast %13 : vector<1x128x128xbf16> to vector<128x128xbf16>
    %cst_11 = arith.constant dense<0.000000e+00> : vector<8x128xf32>
    %15 = tpu.matmul %12, %14, %cst_11 {dimension_numbers = #tpu.dot_dimension_numbers<[1], [0], [0], [1], [0, 0, 1, 1], [], []>} : vector<8x128xbf16>, vector<128x128xbf16>, vector<8x128xf32> -> vector<8x128xf32>
    %cst_12 = arith.constant 0.000000e+00 : f32
    %16 = vector.broadcast %cst_12 : f32 to vector<8x128xf32>
    %17 = arith.subf %16, %15 : vector<8x128xf32>
    %18 = math.exp %17 : vector<8x128xf32>
    %cst_13 = arith.constant 1.000000e+00 : f32
    %19 = vector.broadcast %cst_13 : f32 to vector<8x128xf32>
    %20 = arith.addf %19, %18 : vector<8x128xf32>
    %21 = tpu.reciprocal %20 {approx = true} : vector<8x128xf32> -> vector<8x128xf32>
    %c0_14 = arith.constant 0 : index
    %c0_15 = arith.constant 0 : index
    %22 = vector.load %arg3[%c0_14, %c0_15] : memref<8x128xf32, #tpu.memory_space<vmem>>, vector<8x128xf32>
    tpu.vector_store %arg3[%c0_14, %c0_15], %21 {strides = array<i32>} : memref<8x128xf32, #tpu.memory_space<vmem>>, vector<8x128xf32>,
    return
  }
  func.func @transform_0(%arg0: i32) -> (i32, i32) {
    %c0_i32 = arith.constant 0 : i32
    %c0_i32_0 = arith.constant 0 : i32
    return %arg0, %c0_i32 : i32, i32
  }
  func.func @transform_1(%arg0: i32) -> (i32, i32, i32) {
    %c0_i32 = arith.constant 0 : i32
    %c0_i32_0 = arith.constant 0 : i32
    %c0_i32_1 = arith.constant 0 : i32
    %c0_i32_2 = arith.constant 0 : i32
    return %c0_i32, %c0_i32_0, %c0_i32_1 : i32, i32, i32
  }
  func.func @transform_2(%arg0: i32) -> (i32, i32) {
    %c0_i32 = arith.constant 0 : i32
    %c0_i32_0 = arith.constant 0 : i32
    return %arg0, %c0_i32 : i32, i32
  }
}

</mosaic_0001>

<llo_original>
// kernel: tpu_custom_call.1
$region0: #{tpu_custom_call.1}
  #allocation0 [shape = 'u32[]', space=smem, size = 0x4, offset = 0x4, fixed_abs, tag = 'smem constant byte address 0x4 - core index']
  #allocation1 [shape = 'u32[144,128]{1,0:T(1,128)}', space=vmem, size = 0x12000, scoped, tag = 'internal scratch']
  %s0 = inlined_call_operand.hbm [shape: bf16[8,128], index: 0, kind: input, shape index: {}]
  %s1 = inlined_call_operand.hbm [shape: bf16[3,128,128], index: 1, kind: input, shape index: {}]
  %s2 = inlined_call_operand.hbm [shape: f32[8,128], index: 2, kind: output, shape index: {}]
  %s3 = sld [smem:[#allocation0]]
  $region26: #{tpu_custom_call.1} parent=0
    _
  %s5 = ssub.s32 1, %s3
  %s6 = scalar_select 0, %s5, %s3
  $region1: #{tpu_custom_call.1} parent=0
    #allocation2 [shape = 'u8[2048]{0}', space=vmem, size = 0x800, scoped, tag = 'input window, operand 0, single buffered']
    #allocation3 [shape = 's32[1]{0}', space=sflag, size = 0x4, scoped, tag = 'scoped memory for tpu_custom_call.1']
    #allocation4 [shape = 's32[1]{0}', space=sflag, size = 0x4, scoped, tag = 'scoped memory for tpu_custom_call.1']
    #allocation5 [shape = 'u8[98304]{0}', space=vmem, size = 0x18000, scoped, tag = 'input window, operand 1, single buffered']
    #allocation6 [shape = 's32[1]{0}', space=sflag, size = 0x4, scoped, tag = 'scoped memory for tpu_custom_call.1']
    #allocation7 [shape = 'u8[4096]{0}', space=vmem, size = 0x1000, scoped, tag = 'output window, operand 0, single buffered']
    %7 = vsyncpa [#allocation3], 0
    %8 = vsyncpa [#allocation6], 0
    %9 = vsyncpa [#allocation4], 0
    // Predicated region
    $region2: #{tpu_custom_call.1} parent=1 // pred_check
      _
    $region3: #{tpu_custom_call.1} parent=1 // pred_check_branch
      %11 = sbr.rel (0) target = $region5
    $region4: #{tpu_custom_call.1} parent=1 // pred_region
      %s13 = ssub.s32 64, 64
      %14 = vsyncadd [#allocation3], %s13
      %s16 = sshll.u32 [#allocation2], 4
      %s17 = int_to_ptr.vmem [resolvable:$true] %s16
      %19 = dma.hbm_to_vmem [thread:$0]  %s0, 64, %s17, [#allocation3]
    $region5: #{tpu_custom_call.1} parent=1 // pred_fallthru
      _
    // Predicated region
    $region6: #{tpu_custom_call.1} parent=1 // pred_check
      _
    $region7: #{tpu_custom_call.1} parent=1 // pred_check_branch
      %21 = sbr.rel (0) target = $region9
    $region8: #{tpu_custom_call.1} parent=1 // pred_region
      %s23 = ssub.s32 3072, 3072
      %24 = vsyncadd [#allocation6], %s23
      %s25 = sshll.u32 [#allocation5], 4
      %s26 = int_to_ptr.vmem [resolvable:$true] %s25
      %31 = dma.hbm_to_vmem [thread:$0]  %s1, 3072, %s26, [#allocation6], 64, 64, 4
    $region9: #{tpu_custom_call.1} parent=1 // pred_fallthru
      _
    // Predicated region
    $region10: #{tpu_custom_call.1} parent=1 // pred_check
      _
    $region11: #{tpu_custom_call.1} parent=1 // pred_check_branch
      %33 = sbr.rel (0) target = $region13
    $region12: #{tpu_custom_call.1} parent=1 // pred_region
      %34 = dma.done [#allocation3], 64
    $region13: #{tpu_custom_call.1} parent=1 // pred_fallthru
      _
    // Predicated region
    $region14: #{tpu_custom_call.1} parent=1 // pred_check
      _
    $region15: #{tpu_custom_call.1} parent=1 // pred_check_branch
      %36 = sbr.rel (0) target = $region17
    $region16: #{tpu_custom_call.1} parent=1 // pred_region
      %37 = dma.done [#allocation6], 3072
    $region17: #{tpu_custom_call.1} parent=1 // pred_fallthru
      _
    %v39 = vld [vmem:[#allocation2] sm:$0xf]
    %v40 = vld [vmem:[#allocation5] sm:$0xf]
    %v41 = vld [vmem:[#allocation5 + $0x4] sm:$0xf]
    %v42 = vld [vmem:[#allocation5 + $0x8] sm:$0xf]
    %v43 = vld [vmem:[#allocation5 + $0xc] sm:$0xf]
    %v44 = vld [vmem:[#allocation5 + $0x10] sm:$0xf]
    %v45 = vld [vmem:[#allocation5 + $0x14] sm:$0xf]
    %v46 = vld [vmem:[#allocation5 + $0x18] sm:$0xf]
    %v47 = vld [vmem:[#allocation5 + $0x1c] sm:$0xf]
    %v48 = vld [vmem:[#allocation5 + $0x20] sm:$0xf]
    %v49 = vld [vmem:[#allocation5 + $0x24] sm:$0xf]
    %v50 = vld [vmem:[#allocation5 + $0x28] sm:$0xf]
    %v51 = vld [vmem:[#allocation5 + $0x2c] sm:$0xf]
    %v52 = vld [vmem:[#allocation5 + $0x30] sm:$0xf]
    %v53 = vld [vmem:[#allocation5 + $0x34] sm:$0xf]
    %v54 = vld [vmem:[#allocation5 + $0x38] sm:$0xf]
    %v55 = vld [vmem:[#allocation5 + $0x3c] sm:$0xf]
    %v72 = vunpack.c.l.b16 %v40
    %v73 = vunpack.c.l.b16 %v41
    %v74 = vunpack.c.l.b16 %v42
    %v75 = vunpack.c.l.b16 %v43
    %v76 = vunpack.c.l.b16 %v44
    %v77 = vunpack.c.l.b16 %v45
    %v78 = vunpack.c.l.b16 %v46
    %v79 = vunpack.c.l.b16 %v47
    %v80 = vunpack.c.l.b16 %v48
    %v81 = vunpack.c.l.b16 %v49
    %v82 = vunpack.c.l.b16 %v50
    %v83 = vunpack.c.l.b16 %v51
    %v84 = vunpack.c.l.b16 %v52
    %v85 = vunpack.c.l.b16 %v53
    %v86 = vunpack.c.l.b16 %v54
    %v87 = vunpack.c.l.b16 %v55
    %v88 = vpack.c.b16 %v73, %v72
    %v89 = vpack.c.b16 %v75, %v74
    %v90 = vpack.c.b16 %v77, %v76
    %v91 = vpack.c.b16 %v79, %v78
    %v92 = vpack.c.b16 %v81, %v80
    %v93 = vpack.c.b16 %v83, %v82
    %v94 = vpack.c.b16 %v85, %v84
    %v95 = vpack.c.b16 %v87, %v86
    %104 = vmatprep.subr.bf16.mxu0 0
    %105 = vmatpush1.bf16.msra.mxu0 %v95
    %106 = vmatprep.subr.bf16.mxu0 0
    %107 = vmatpush1.bf16.msra.mxu0 %v94
    %108 = vmatprep.subr.bf16.mxu0 0
    %109 = vmatpush1.bf16.msra.mxu0 %v93
    %110 = vmatprep.subr.bf16.mxu0 0
    %111 = vmatpush1.bf16.msra.mxu0 %v92
    %112 = vmatprep.subr.bf16.mxu0 0
    %113 = vmatpush1.bf16.msra.mxu0 %v91
    %114 = vmatprep.subr.bf16.mxu0 0
    %115 = vmatpush1.bf16.msra.mxu0 %v90
    %116 = vmatprep.subr.bf16.mxu0 0
    %117 = vmatpush1.bf16.msra.mxu0 %v89
    %118 = vmatprep.subr.bf16.mxu0 0
    %119 = vmatpush1.bf16.msra.mxu0 %v88
    %120 = vmatprep.subr.bf16.mxu0 0
    %121 = vmatpush2.bf16.msra.mxu0 0
    %122 = vmatprep.subr.bf16.mxu0 0
    %123 = vmatpush2.bf16.msra.mxu0 0
    %124 = vmatprep.subr.bf16.mxu0 0
    %125 = vmatpush2.bf16.msra.mxu0 0
    %126 = vmatprep.subr.bf16.mxu0 0
    %127 = vmatpush2.bf16.msra.mxu0 0
    %128 = vmatprep.subr.bf16.mxu0 0
    %129 = vmatpush2.bf16.msra.mxu0 0
    %130 = vmatprep.subr.bf16.mxu0 0
    %131 = vmatpush2.bf16.msra.mxu0 0
    %132 = vmatprep.subr.bf16.mxu0 0
    %133 = vmatpush2.bf16.msra.mxu0 0
    %134 = vmatprep.subr.bf16.mxu0 0
    %135 = vmatpush2.bf16.msra.mxu0 0
    %136 = vmatprep.mubr.bf16.mxu0 0
    %137 = vmatmul.mubr.bf16.gmra.mxu0 %v39
    %v138 = vpop.f32.mrf.mxu0
    %v139 = vadd.f32 0.0, %v138
    %v140 = vpop.f32.mrf.mxu0
    %v141 = vpop.f32.mrf.mxu0
    %v142 = vpop.f32.mrf.mxu0
    %143 = vdwg.mxu0
    %v144 = vmax.f32 %v139, 0.0
    %v145 = vpack.c.bf16 %v144, %v144
    %s146 = scalar_lea.vmem [#allocation5], 64
    %v147 = vld [vmem:[%s146] sm:$0xf]
    %v148 = vld [vmem:[%s146 + $0x4] sm:$0xf]
    %v149 = vld [vmem:[%s146 + $0x8] sm:$0xf]
    %v150 = vld [vmem:[%s146 + $0xc] sm:$0xf]
    %v151 = vld [vmem:[%s146 + $0x10] sm:$0xf]
    %v152 = vld [vmem:[%s146 + $0x14] sm:$0xf]
    %v153 = vld [vmem:[%s146 + $0x18] sm:$0xf]
    %v154 = vld [vmem:[%s146 + $0x1c] sm:$0xf]
    %v155 = vld [vmem:[%s146 + $0x20] sm:$0xf]
    %v156 = vld [vmem:[%s146 + $0x24] sm:$0xf]
    %v157 = vld [vmem:[%s146 + $0x28] sm:$0xf]
    %v158 = vld [vmem:[%s146 + $0x2c] sm:$0xf]
    %v159 = vld [vmem:[%s146 + $0x30] sm:$0xf]
    %v160 = vld [vmem:[%s146 + $0x34] sm:$0xf]
    %v161 = vld [vmem:[%s146 + $0x38] sm:$0xf]
    %v162 = vld [vmem:[%s146 + $0x3c] sm:$0xf]
    %v179 = vunpack.c.l.b16 %v147
    %v180 = vunpack.c.l.b16 %v148
    %v181 = vunpack.c.l.b16 %v149
    %v182 = vunpack.c.l.b16 %v150
    %v183 = vunpack.c.l.b16 %v151
    %v184 = vunpack.c.l.b16 %v152
    %v185 = vunpack.c.l.b16 %v153
    %v186 = vunpack.c.l.b16 %v154
    %v187 = vunpack.c.l.b16 %v155
    %v188 = vunpack.c.l.b16 %v156
    %v189 = vunpack.c.l.b16 %v157
    %v190 = vunpack.c.l.b16 %v158
    %v191 = vunpack.c.l.b16 %v159
    %v192 = vunpack.c.l.b16 %v160
    %v193 = vunpack.c.l.b16 %v161
    %v194 = vunpack.c.l.b16 %v162
    %v195 = vpack.c.b16 %v180, %v179
    %v196 = vpack.c.b16 %v182, %v181
    %v197 = vpack.c.b16 %v184, %v183
    %v198 = vpack.c.b16 %v186, %v185
    %v199 = vpack.c.b16 %v188, %v187
    %v200 = vpack.c.b16 %v190, %v189
    %v201 = vpack.c.b16 %v192, %v191
    %v202 = vpack.c.b16 %v194, %v193
    %211 = vmatprep.subr.bf16.mxu0 0
    %212 = vmatpush1.bf16.msra.mxu0 %v202
    %213 = vmatprep.subr.bf16.mxu0 0
    %214 = vmatpush1.bf16.msra.mxu0 %v201
    %215 = vmatprep.subr.bf16.mxu0 0
    %216 = vmatpush1.bf16.msra.mxu0 %v200
    %217 = vmatprep.subr.bf16.mxu0 0
    %218 = vmatpush1.bf16.msra.mxu0 %v199
    %219 = vmatprep.subr.bf16.mxu0 0
    %220 = vmatpush1.bf16.msra.mxu0 %v198
    %221 = vmatprep.subr.bf16.mxu0 0
    %222 = vmatpush1.bf16.msra.mxu0 %v197
    %223 = vmatprep.subr.bf16.mxu0 0
    %224 = vmatpush1.bf16.msra.mxu0 %v196
    %225 = vmatprep.subr.bf16.mxu0 0
    %226 = vmatpush1.bf16.msra.mxu0 %v195
    %227 = vmatprep.subr.bf16.mxu0 0
    %228 = vmatpush2.bf16.msra.mxu0 0
    %229 = vmatprep.subr.bf16.mxu0 0
    %230 = vmatpush2.bf16.msra.mxu0 0
    %231 = vmatprep.subr.bf16.mxu0 0
    %232 = vmatpush2.bf16.msra.mxu0 0
    %233 = vmatprep.subr.bf16.mxu0 0
    %234 = vmatpush2.bf16.msra.mxu0 0
    %235 = vmatprep.subr.bf16.mxu0 0
    %236 = vmatpush2.bf16.msra.mxu0 0
    %237 = vmatprep.subr.bf16.mxu0 0
    %238 = vmatpush2.bf16.msra.mxu0 0
    %239 = vmatprep.subr.bf16.mxu0 0
    %240 = vmatpush2.bf16.msra.mxu0 0
    %241 = vmatprep.subr.bf16.mxu0 0
    %242 = vmatpush2.bf16.msra.mxu0 0
    %243 = vmatprep.mubr.bf16.mxu0 0
    %244 = vmatmul.mubr.bf16.gmra.mxu0 %v145
    %v245 = vpop.f32.mrf.mxu0
    %v246 = vadd.f32 0.0, %v245
    %v247 = vpop.f32.mrf.mxu0
    %v248 = vpop.f32.mrf.mxu0
    %v249 = vpop.f32.mrf.mxu0
    %250 = vdwg.mxu0
    %v251 = vmax.f32 %v246, 0.0
    %v252 = vpack.c.bf16 %v251, %v251
    %s253 = scalar_lea.vmem [#allocation5], 128
    %v254 = vld [vmem:[%s253] sm:$0xf]
    %v255 = vld [vmem:[%s253 + $0x4] sm:$0xf]
    %v256 = vld [vmem:[%s253 + $0x8] sm:$0xf]
    %v257 = vld [vmem:[%s253 + $0xc] sm:$0xf]
    %v258 = vld [vmem:[%s253 + $0x10] sm:$0xf]
    %v259 = vld [vmem:[%s253 + $0x14] sm:$0xf]
    %v260 = vld [vmem:[%s253 + $0x18] sm:$0xf]
    %v261 = vld [vmem:[%s253 + $0x1c] sm:$0xf]
    %v262 = vld [vmem:[%s253 + $0x20] sm:$0xf]
    %v263 = vld [vmem:[%s253 + $0x24] sm:$0xf]
    %v264 = vld [vmem:[%s253 + $0x28] sm:$0xf]
    %v265 = vld [vmem:[%s253 + $0x2c] sm:$0xf]
    %v266 = vld [vmem:[%s253 + $0x30] sm:$0xf]
    %v267 = vld [vmem:[%s253 + $0x34] sm:$0xf]
    %v268 = vld [vmem:[%s253 + $0x38] sm:$0xf]
    %v269 = vld [vmem:[%s253 + $0x3c] sm:$0xf]
    %v286 = vunpack.c.l.b16 %v254
    %v287 = vunpack.c.l.b16 %v255
    %v288 = vunpack.c.l.b16 %v256
    %v289 = vunpack.c.l.b16 %v257
    %v290 = vunpack.c.l.b16 %v258
    %v291 = vunpack.c.l.b16 %v259
    %v292 = vunpack.c.l.b16 %v260
    %v293 = vunpack.c.l.b16 %v261
    %v294 = vunpack.c.l.b16 %v262
    %v295 = vunpack.c.l.b16 %v263
    %v296 = vunpack.c.l.b16 %v264
    %v297 = vunpack.c.l.b16 %v265
    %v298 = vunpack.c.l.b16 %v266
    %v299 = vunpack.c.l.b16 %v267
    %v300 = vunpack.c.l.b16 %v268
    %v301 = vunpack.c.l.b16 %v269
    %v302 = vpack.c.b16 %v287, %v286
    %v303 = vpack.c.b16 %v289, %v288
    %v304 = vpack.c.b16 %v291, %v290
    %v305 = vpack.c.b16 %v293, %v292
    %v306 = vpack.c.b16 %v295, %v294
    %v307 = vpack.c.b16 %v297, %v296
    %v308 = vpack.c.b16 %v299, %v298
    %v309 = vpack.c.b16 %v301, %v300
    %318 = vmatprep.subr.bf16.mxu0 0
    %319 = vmatpush1.bf16.msra.mxu0 %v309
    %320 = vmatprep.subr.bf16.mxu0 0
    %321 = vmatpush1.bf16.msra.mxu0 %v308
    %322 = vmatprep.subr.bf16.mxu0 0
    %323 = vmatpush1.bf16.msra.mxu0 %v307
    %324 = vmatprep.subr.bf16.mxu0 0
    %325 = vmatpush1.bf16.msra.mxu0 %v306
    %326 = vmatprep.subr.bf16.mxu0 0
    %327 = vmatpush1.bf16.msra.mxu0 %v305
    %328 = vmatprep.subr.bf16.mxu0 0
    %329 = vmatpush1.bf16.msra.mxu0 %v304
    %330 = vmatprep.subr.bf16.mxu0 0
    %331 = vmatpush1.bf16.msra.mxu0 %v303
    %332 = vmatprep.subr.bf16.mxu0 0
    %333 = vmatpush1.bf16.msra.mxu0 %v302
    %334 = vmatprep.subr.bf16.mxu0 0
    %335 = vmatpush2.bf16.msra.mxu0 0
    %336 = vmatprep.subr.bf16.mxu0 0
    %337 = vmatpush2.bf16.msra.mxu0 0
    %338 = vmatprep.subr.bf16.mxu0 0
    %339 = vmatpush2.bf16.msra.mxu0 0
    %340 = vmatprep.subr.bf16.mxu0 0
    %341 = vmatpush2.bf16.msra.mxu0 0
    %342 = vmatprep.subr.bf16.mxu0 0
    %343 = vmatpush2.bf16.msra.mxu0 0
    %344 = vmatprep.subr.bf16.mxu0 0
    %345 = vmatpush2.bf16.msra.mxu0 0
    %346 = vmatprep.subr.bf16.mxu0 0
    %347 = vmatpush2.bf16.msra.mxu0 0
    %348 = vmatprep.subr.bf16.mxu0 0
    %349 = vmatpush2.bf16.msra.mxu0 0
    %350 = vmatprep.mubr.bf16.mxu0 0
    %351 = vmatmul.mubr.bf16.gmra.mxu0 %v252
    %v352 = vpop.f32.mrf.mxu0
    %v353 = vadd.f32 0.0, %v352
    %v354 = vpop.f32.mrf.mxu0
    %v355 = vpop.f32.mrf.mxu0
    %v356 = vpop.f32.mrf.mxu0
    %357 = vdwg.mxu0
    %v358 = vsub.f32 0.0, %v353
    %v359 = vmul.f32 %v358, 1.442695
    %v360 = vpow.pop %v359
    %v361 = vadd.f32 %v360, 1.0
    %v362 = vrcp.pop %v361
    %363 = vst [vmem:[#allocation7] sm:$0xff] %v362
    // Predicated region
    $region18: #{tpu_custom_call.1} parent=1 // pred_check
      _
    $region19: #{tpu_custom_call.1} parent=1 // pred_check_branch
      %365 = sbr.rel (0) target = $region21
    $region20: #{tpu_custom_call.1} parent=1 // pred_region
      %s367 = ssub.s32 128, 128
      %368 = vsyncadd [#allocation4], %s367
      %s370 = sshll.u32 [#allocation7], 4
      %s371 = int_to_ptr.vmem [resolvable:$true] %s370
      %373 = dma.vmem_to_hbm [thread:$0]  %s371, 128, %s2, [#allocation4]
    $region21: #{tpu_custom_call.1} parent=1 // pred_fallthru
      _
    // Predicated region
    $region22: #{tpu_custom_call.1} parent=1 // pred_check
      _
    $region23: #{tpu_custom_call.1} parent=1 // pred_check_branch
      %375 = sbr.rel (0) target = $region25
    $region24: #{tpu_custom_call.1} parent=1 // pred_region
      %376 = dma.done [#allocation4], 128
    $region25: #{tpu_custom_call.1} parent=1 // pred_fallthru
      _
    %377 = vsyncpa [#allocation3], 1
    %378 = vsyncpa [#allocation6], 1
    %379 = vsyncpa [#allocation4], 1

</llo_original>
